<compile_context>
chip_gen: v7x
topology: tpu7x:2x2x1
jax: 0.10.0
libtpu: 0.0.40
codegen_flags: <defaults>
</compile_context>

<pallas_src>
import functools

import jax
import jax.numpy as jnp
from jax.experimental import pallas as pl
from jax.experimental.pallas import tpu as pltpu


# ----------------------------------------------------------------------------
# Pallas kernel: REN forward hot path for one batch tile
# ----------------------------------------------------------------------------
def ren_forward_kernel(u_ref, x0_ref, w_ref, out_ref, *, d, q, m, p):
    """u_ref: (TB, m), x0_ref: (1, d), w_ref: (d+q+m, q+d+p), out_ref: (TB, d+p)."""
    u = u_ref[...]                                    # (TB, m)
    x0 = x0_ref[...]                                  # (1, d)
    Wx = w_ref[0:d, :]                                # (d, width)  rows hit by x
    Wu = w_ref[d + q:, :]                             # (m, width)  rows hit by u

    # z = [ v/Lambda | x_next | y ]  (w-contribution accumulated below).
    # x0 contribution is (1, width) and broadcasts over the batch tile.
    z = (jnp.dot(u, Wu, preferred_element_type=jnp.float32)
         + jnp.dot(x0, Wx, preferred_element_type=jnp.float32))    # (TB, width)

    # Forward substitution: D11 is strictly lower-triangular, so column i of the v-part
    # is final once rows 0..i-1 have been accumulated.  Fully unrolled (q static, small);
    # each step = one static lane extract + one tanh (EUP) + one rank-1 VPU FMA.
    for i in range(q):
        w_i = jnp.tanh(z[:, i:i + 1])                 # (TB, 1)   (1/Lambda already folded in)
        z = z + w_i * w_ref[d + i:d + i + 1, :]       # rank-1 update across full width

    out_ref[...] = z[:, q:]                           # [x_next (d) | y (p)]


def _round_up(n, mult):
    return ((n + mult - 1) // mult) * mult


def ren_forward_pallas(u, x0, w_all, dims, *, max_tile_b=512):
    """u: (B, input_dim), x0: (1, dim_internal). Returns (y (B, p), x_next (B, d))."""
    d, q, m, p = dims
    B = u.shape[0]
    width = q + d + p

    # Batch tiling: tile is a multiple of 8 sublanes; pad the batch so the grid tiles it.
    if B <= max_tile_b:
        tile = _round_up(B, 8)
        b_pad = tile
    else:
        tile = max_tile_b
        b_pad = _round_up(B, tile)
    if b_pad != B:
        u = jnp.pad(u, ((0, b_pad - B), (0, 0)))

    kernel = functools.partial(ren_forward_kernel, d=d, q=q, m=m, p=p)
    out = pl.pallas_call(
        kernel,
        grid=(b_pad // tile,),
        in_specs=[
            pl.BlockSpec((tile, m), lambda i: (i, 0)),            # u: tiled over batch
            pl.BlockSpec((1, d), lambda i: (0, 0)),               # x0: VMEM-resident
            pl.BlockSpec((d + q + m, width), lambda i: (0, 0)),   # weights: VMEM-resident
        ],
        out_specs=pl.BlockSpec((tile, d + p), lambda i: (i, 0)),
        out_shape=jax.ShapeDtypeStruct((b_pad, d + p), jnp.float32),
        compiler_params=pltpu.CompilerParams(dimension_semantics=("parallel",)),
    )(u, x0, w_all)

    x_next = out[:B, :d]
    y = out[:B, d:]
    return y, x_next


# ----------------------------------------------------------------------------
# Parameter setup (mirrors ContractiveREN.__init__ + _update_model_param)
# ----------------------------------------------------------------------------
def init_ren_params(key, input_dim, output_dim, dim_internal, dim_nl,
                    initialization_std=0.5):
    ks = jax.random.split(key, 5)
    n = 2 * dim_internal + dim_nl
    X = jax.random.normal(ks[0], (n, n), jnp.float32) * initialization_std
    Y = jax.random.normal(ks[1], (dim_internal, dim_internal), jnp.float32) * initialization_std
    B2 = jax.random.normal(ks[2], (dim_internal, input_dim), jnp.float32) * initialization_std
    C2 = jax.random.normal(ks[3], (output_dim, dim_internal), jnp.float32) * initialization_std
    D12 = jax.random.normal(ks[4], (dim_nl, input_dim), jnp.float32) * initialization_std
    # linear_output=True  =>  D21, D22 are zero (non-trainable)
    D21 = jnp.zeros((output_dim, dim_nl), jnp.float32)
    D22 = jnp.zeros((output_dim, input_dim), jnp.float32)
    return dict(X=X, Y=Y, B2=B2, C2=C2, D12=D12, D21=D21, D22=D22)


def update_model_param(raw, dim_internal, dim_nl,
                       epsilon=0.001, contraction_rate_lb=1.0):
    """Mirrors ContractiveREN._update_model_param (plain JAX, not the hot path)."""
    X, Y = raw["X"], raw["Y"]
    n = 2 * dim_internal + dim_nl
    H = X.T @ X + epsilon * jnp.eye(n, dtype=jnp.float32)
    d, q = dim_internal, dim_nl
    H11 = H[:d, :d]
    H21 = H[d:d + q, :d]
    H22 = H[d:d + q, d:d + q]
    H31 = H[d + q:, :d]
    H32 = H[d + q:, d:d + q]
    H33 = H[d + q:, d + q:]
    P = H33
    F_mat = H31
    B1 = H32
    E = 0.5 * (H11 + contraction_rate_lb * P + Y - Y.T)
    E_inv = jnp.linalg.inv(E)   # TODO(synk): no clean Pallas equivalent for matrix inverse.
    Lam = 0.5 * jnp.diag(H22)
    D11 = -jnp.tril(H22, k=-1)
    C1 = -H21
    return (C1, D11, raw["D12"], Lam, F_mat, B1, raw["B2"], E_inv,
            raw["C2"], raw["D21"], raw["D22"])


def pack_forward_weights(params):
    """Fold 1/Lambda, E^{-1} and C2 into one pre-transposed weight slab for the kernel.

    Layout: rows [x (d) | w (q) | u (m)], cols [v/Lambda (q) | x_next (d) | y (p)].
    """
    (C1, D11, D12, Lam, F_mat, B1, B2, E_inv, C2, D21, D22) = params
    inv_lam = (1.0 / Lam)[:, None]
    C1s, D11s, D12s = C1 * inv_lam, D11 * inv_lam, D12 * inv_lam      # v / Lambda
    FE, B1E, B2E = E_inv @ F_mat, E_inv @ B1, E_inv @ B2              # E^{-1} folded into x_next
    CYx, CYw, CYu = C2 @ FE, C2 @ B1E + D21, C2 @ B2E + D22           # C2 folded into y
    Wx = jnp.concatenate([C1s.T, FE.T, CYx.T], axis=1)                # (d, q+d+p)
    Ww = jnp.concatenate([D11s.T, B1E.T, CYw.T], axis=1)              # (q, q+d+p)
    Wu = jnp.concatenate([D12s.T, B2E.T, CYu.T], axis=1)              # (m, q+d+p)
    return jnp.concatenate([Wx, Ww, Wu], axis=0).astype(jnp.float32)  # (d+q+m, q+d+p)


# ----------------------------------------------------------------------------
# Pure-JAX reference (mirrors the PyTorch forward loop exactly) for validation
# ----------------------------------------------------------------------------
def ren_forward_ref(u, x0, params):
    (C1, D11, D12, Lam, F_mat, B1, B2, E_inv, C2, D21, D22) = params
    bsz = u.shape[0]
    q = C1.shape[0]
    w = jnp.zeros((bsz, q), jnp.float32)
    for i in range(q):
        v = x0 @ C1[i, :] + w @ D11[i, :] + u @ D12[i, :]   # (B,)
        w = w.at[:, i].set(jnp.tanh(v / Lam[i]))
    x_new = (x0 @ F_mat.T + w @ B1.T + u @ B2.T) @ E_inv.T
    y = x_new @ C2.T + w @ D21.T + u @ D22.T
    return y, x_new


# ----------------------------------------------------------------------------
if __name__ == "__main__":
    input_dim, output_dim, dim_internal, dim_nl = 4, 2, 8, 8
    batch = 2

    key = jax.random.PRNGKey(0)
    kparam, ku = jax.random.split(key)
    raw = init_ren_params(kparam, input_dim, output_dim, dim_internal, dim_nl)
    params = update_model_param(raw, dim_internal, dim_nl)
    w_all = pack_forward_weights(params)

    # PyTorch forward takes u of shape (batch, 1, input_dim); squeeze the horizon dim.
    u3 = jax.random.normal(ku, (batch, 1, input_dim), jnp.float32)
    u = u3.reshape(batch, input_dim)
    x0 = jnp.zeros((1, dim_internal), jnp.float32)  # internal_state_init=None -> zeros

    dims = (dim_internal, dim_nl, input_dim, output_dim)
    y, x_new = ren_forward_pallas(u, x0, w_all, dims)
    y = jax.block_until_ready(y)
    x_new = jax.block_until_ready(x_new)

    y_ref, x_ref = ren_forward_ref(u, x0, params)
    assert jnp.allclose(y, y_ref, atol=1e-4, rtol=1e-4), (y, y_ref)
    assert jnp.allclose(x_new, x_ref, atol=1e-4, rtol=1e-4), (x_new, x_ref)

    # reshape back to the PyTorch output convention (batch, 1, output_dim)
    _ = y.reshape(batch, 1, output_dim)
    print("KERNEL_OK")
</pallas_src>

<mosaic_0001>
module attributes {stable_mosaic.version = 11 : i64} {
  func.func @ren_forward_kernel(%arg0: i32, %arg1: memref<8x4xf32, #tpu.memory_space<vmem>>, %arg2: memref<1x8xf32, #tpu.memory_space<vmem>>, %arg3: memref<20x18xf32, #tpu.memory_space<vmem>>, %arg4: memref<8x10xf32, #tpu.memory_space<vmem>>) attributes {dimension_semantics = [#tpu.dimension_semantics<parallel>], iteration_bounds = array<i64: 1>, scalar_prefetch = 0 : i64, scratch_operands = 0 : i64, tpu.core_type = #tpu.core_type<tc>, window_params = [{transform_indices = @transform_0, window_bounds = array<i64: 8, 4>}, {pipeline_mode = #tpu.pipeline_mode<synchronous>, transform_indices = @transform_1, window_bounds = array<i64: 1, 8>}, {pipeline_mode = #tpu.pipeline_mode<synchronous>, transform_indices = @transform_2, window_bounds = array<i64: 20, 18>}, {transform_indices = @transform_3, window_bounds = array<i64: 8, 10>}]} {
    %c0 = arith.constant 0 : index
    %c0_0 = arith.constant 0 : index
    %0 = vector.load %arg1[%c0, %c0_0] : memref<8x4xf32, #tpu.memory_space<vmem>>, vector<8x4xf32>
    %c0_1 = arith.constant 0 : index
    %c0_2 = arith.constant 0 : index
    %1 = vector.load %arg2[%c0_1, %c0_2] : memref<1x8xf32, #tpu.memory_space<vmem>>, vector<1x8xf32>
    %c0_3 = arith.constant 0 : index
    %c0_4 = arith.constant 0 : index
    %2 = vector.load %arg3[%c0_3, %c0_4] : memref<20x18xf32, #tpu.memory_space<vmem>>, vector<8x18xf32>
    %c16 = arith.constant 16 : index
    %c0_5 = arith.constant 0 : index
    %3 = vector.load %arg3[%c16, %c0_5] : memref<20x18xf32, #tpu.memory_space<vmem>>, vector<4x18xf32>
    %cst = arith.constant dense<0.000000e+00> : vector<8x18xf32>
    %4 = tpu.matmul %0, %3, %cst {dimension_numbers = #tpu.dot_dimension_numbers<[1], [0], [0], [1], [0, 0, 1, 1], [], []>} : vector<8x4xf32>, vector<4x18xf32>, vector<8x18xf32> -> vector<8x18xf32>
    %cst_6 = arith.constant dense<0.000000e+00> : vector<1x18xf32>
    %5 = tpu.matmul %1, %2, %cst_6 {dimension_numbers = #tpu.dot_dimension_numbers<[1], [0], [0], [1], [0, 0, 1, 1], [], []>} : vector<1x8xf32>, vector<8x18xf32>, vector<1x18xf32> -> vector<1x18xf32>
    %6 = vector.broadcast %5 : vector<1x18xf32> to vector<8x18xf32>
    %7 = arith.addf %4, %6 : vector<8x18xf32>
    %8 = vector.extract_strided_slice %7 {offsets = [0, 0], sizes = [8, 1], strides = [1, 1]} : vector<8x18xf32> to vector<8x1xf32>
    %9 = math.tanh %8 : vector<8x1xf32>
    %c8 = arith.constant 8 : index
    %c0_7 = arith.constant 0 : index
    %10 = vector.load %arg3[%c8, %c0_7] : memref<20x18xf32, #tpu.memory_space<vmem>>, vector<1x18xf32>
    %11 = vector.broadcast %9 : vector<8x1xf32> to vector<8x18xf32>
    %12 = vector.broadcast %10 : vector<1x18xf32> to vector<8x18xf32>
    %13 = arith.mulf %11, %12 : vector<8x18xf32>
    %14 = arith.addf %7, %13 : vector<8x18xf32>
    %15 = vector.extract_strided_slice %14 {offsets = [0, 1], sizes = [8, 1], strides = [1, 1]} : vector<8x18xf32> to vector<8x1xf32>
    %16 = math.tanh %15 : vector<8x1xf32>
    %c9 = arith.constant 9 : index
    %c0_8 = arith.constant 0 : index
    %17 = vector.load %arg3[%c9, %c0_8] : memref<20x18xf32, #tpu.memory_space<vmem>>, vector<1x18xf32>
    %18 = vector.broadcast %16 : vector<8x1xf32> to vector<8x18xf32>
    %19 = vector.broadcast %17 : vector<1x18xf32> to vector<8x18xf32>
    %20 = arith.mulf %18, %19 : vector<8x18xf32>
    %21 = arith.addf %14, %20 : vector<8x18xf32>
    %22 = vector.extract_strided_slice %21 {offsets = [0, 2], sizes = [8, 1], strides = [1, 1]} : vector<8x18xf32> to vector<8x1xf32>
    %23 = math.tanh %22 : vector<8x1xf32>
    %c10 = arith.constant 10 : index
    %c0_9 = arith.constant 0 : index
    %24 = vector.load %arg3[%c10, %c0_9] : memref<20x18xf32, #tpu.memory_space<vmem>>, vector<1x18xf32>
    %25 = vector.broadcast %23 : vector<8x1xf32> to vector<8x18xf32>
    %26 = vector.broadcast %24 : vector<1x18xf32> to vector<8x18xf32>
    %27 = arith.mulf %25, %26 : vector<8x18xf32>
    %28 = arith.addf %21, %27 : vector<8x18xf32>
    %29 = vector.extract_strided_slice %28 {offsets = [0, 3], sizes = [8, 1], strides = [1, 1]} : vector<8x18xf32> to vector<8x1xf32>
    %30 = math.tanh %29 : vector<8x1xf32>
    %c11 = arith.constant 11 : index
    %c0_10 = arith.constant 0 : index
    %31 = vector.load %arg3[%c11, %c0_10] : memref<20x18xf32, #tpu.memory_space<vmem>>, vector<1x18xf32>
    %32 = vector.broadcast %30 : vector<8x1xf32> to vector<8x18xf32>
    %33 = vector.broadcast %31 : vector<1x18xf32> to vector<8x18xf32>
    %34 = arith.mulf %32, %33 : vector<8x18xf32>
    %35 = arith.addf %28, %34 : vector<8x18xf32>
    %36 = vector.extract_strided_slice %35 {offsets = [0, 4], sizes = [8, 1], strides = [1, 1]} : vector<8x18xf32> to vector<8x1xf32>
    %37 = math.tanh %36 : vector<8x1xf32>
    %c12 = arith.constant 12 : index
    %c0_11 = arith.constant 0 : index
    %38 = vector.load %arg3[%c12, %c0_11] : memref<20x18xf32, #tpu.memory_space<vmem>>, vector<1x18xf32>
    %39 = vector.broadcast %37 : vector<8x1xf32> to vector<8x18xf32>
    %40 = vector.broadcast %38 : vector<1x18xf32> to vector<8x18xf32>
    %41 = arith.mulf %39, %40 : vector<8x18xf32>
    %42 = arith.addf %35, %41 : vector<8x18xf32>
    %43 = vector.extract_strided_slice %42 {offsets = [0, 5], sizes = [8, 1], strides = [1, 1]} : vector<8x18xf32> to vector<8x1xf32>
    %44 = math.tanh %43 : vector<8x1xf32>
    %c13 = arith.constant 13 : index
    %c0_12 = arith.constant 0 : index
    %45 = vector.load %arg3[%c13, %c0_12] : memref<20x18xf32, #tpu.memory_space<vmem>>, vector<1x18xf32>
    %46 = vector.broadcast %44 : vector<8x1xf32> to vector<8x18xf32>
    %47 = vector.broadcast %45 : vector<1x18xf32> to vector<8x18xf32>
    %48 = arith.mulf %46, %47 : vector<8x18xf32>
    %49 = arith.addf %42, %48 : vector<8x18xf32>
    %50 = vector.extract_strided_slice %49 {offsets = [0, 6], sizes = [8, 1], strides = [1, 1]} : vector<8x18xf32> to vector<8x1xf32>
    %51 = math.tanh %50 : vector<8x1xf32>
    %c14 = arith.constant 14 : index
    %c0_13 = arith.constant 0 : index
    %52 = vector.load %arg3[%c14, %c0_13] : memref<20x18xf32, #tpu.memory_space<vmem>>, vector<1x18xf32>
    %53 = vector.broadcast %51 : vector<8x1xf32> to vector<8x18xf32>
    %54 = vector.broadcast %52 : vector<1x18xf32> to vector<8x18xf32>
    %55 = arith.mulf %53, %54 : vector<8x18xf32>
    %56 = arith.addf %49, %55 : vector<8x18xf32>
    %57 = vector.extract_strided_slice %56 {offsets = [0, 7], sizes = [8, 1], strides = [1, 1]} : vector<8x18xf32> to vector<8x1xf32>
    %58 = math.tanh %57 : vector<8x1xf32>
    %c15 = arith.constant 15 : index
    %c0_14 = arith.constant 0 : index
    %59 = vector.load %arg3[%c15, %c0_14] : memref<20x18xf32, #tpu.memory_space<vmem>>, vector<1x18xf32>
    %60 = vector.broadcast %58 : vector<8x1xf32> to vector<8x18xf32>
    %61 = vector.broadcast %59 : vector<1x18xf32> to vector<8x18xf32>
    %62 = arith.mulf %60, %61 : vector<8x18xf32>
    %63 = arith.addf %56, %62 : vector<8x18xf32>
    %64 = vector.extract_strided_slice %63 {offsets = [0, 8], sizes = [8, 10], strides = [1, 1]} : vector<8x18xf32> to vector<8x10xf32>
    %c0_15 = arith.constant 0 : index
    %c0_16 = arith.constant 0 : index
    %65 = vector.load %arg4[%c0_15, %c0_16] : memref<8x10xf32, #tpu.memory_space<vmem>>, vector<8x10xf32>
    tpu.vector_store %arg4[%c0_15, %c0_16], %64 {strides = array<i32>} : memref<8x10xf32, #tpu.memory_space<vmem>>, vector<8x10xf32>,
    return
  }
  func.func @transform_0(%arg0: i32) -> (i32, i32) {
    %c0_i32 = arith.constant 0 : i32
    %c0_i32_0 = arith.constant 0 : i32
    return %arg0, %c0_i32 : i32, i32
  }
  func.func @transform_1(%arg0: i32) -> (i32, i32) {
    %c0_i32 = arith.constant 0 : i32
    %c0_i32_0 = arith.constant 0 : i32
    %c0_i32_1 = arith.constant 0 : i32
    return %c0_i32, %c0_i32_0 : i32, i32
  }
  func.func @transform_2(%arg0: i32) -> (i32, i32) {
    %c0_i32 = arith.constant 0 : i32
    %c0_i32_0 = arith.constant 0 : i32
    %c0_i32_1 = arith.constant 0 : i32
    return %c0_i32, %c0_i32_0 : i32, i32
  }
  func.func @transform_3(%arg0: i32) -> (i32, i32) {
    %c0_i32 = arith.constant 0 : i32
    %c0_i32_0 = arith.constant 0 : i32
    return %arg0, %c0_i32 : i32, i32
  }
}

</mosaic_0001>

<llo_original>
// kernel: tpu_custom_call.1
$region0: #{tpu_custom_call.1}
  #allocation0 [shape = 'u32[]', space=smem, size = 0x4, offset = 0x4, fixed_abs, tag = 'smem constant byte address 0x4 - core index']
  #allocation1 [shape = 'u32[144,128]{1,0:T(1,128)}', space=vmem, size = 0x12000, scoped, tag = 'internal scratch']
  %s0 = inlined_call_operand.vmem [shape: f32[8,4], index: 0, kind: input, shape index: {}]
  %s1 = inlined_call_operand.vmem [shape: f32[1,8], index: 1, kind: input, shape index: {}]
  %s2 = inlined_call_operand.hbm [shape: f32[20,18], index: 2, kind: input, shape index: {}]
  %s3 = inlined_call_operand.hbm [shape: f32[8,10], index: 3, kind: output, shape index: {}]
  %s4 = sld [smem:[#allocation0]]
  $region26: #{tpu_custom_call.1} parent=0
    _
  %s6 = ssub.s32 1, %s4
  %s7 = scalar_select 0, %s6, %s4
  $region1: #{tpu_custom_call.1} parent=0
    #allocation2 [shape = 'u8[12288]{0}', space=vmem, size = 0x3000, scoped, tag = 'input window, operand 2, single buffered']
    #allocation3 [shape = 's32[1]{0}', space=sflag, size = 0x4, scoped, tag = 'scoped memory for tpu_custom_call.1']
    #allocation4 [shape = 's32[1]{0}', space=sflag, size = 0x4, scoped, tag = 'scoped memory for tpu_custom_call.1']
    #allocation5 [shape = 'u8[4096]{0}', space=vmem, size = 0x1000, scoped, tag = 'output window, operand 0, single buffered']
    %8 = vsyncpa [#allocation3], 0
    %9 = vsyncpa [#allocation4], 0
    // Predicated region
    $region2: #{tpu_custom_call.1} parent=1 // pred_check
      _
    $region3: #{tpu_custom_call.1} parent=1 // pred_check_branch
      %11 = sbr.rel (0) target = $region5
    $region4: #{tpu_custom_call.1} parent=1 // pred_region
      _
    $region5: #{tpu_custom_call.1} parent=1 // pred_fallthru
      _
    // Predicated region
    $region6: #{tpu_custom_call.1} parent=1 // pred_check
      _
    $region7: #{tpu_custom_call.1} parent=1 // pred_check_branch
      %13 = sbr.rel (0) target = $region9
    $region8: #{tpu_custom_call.1} parent=1 // pred_region
      _
    $region9: #{tpu_custom_call.1} parent=1 // pred_fallthru
      _
    // Predicated region
    $region10: #{tpu_custom_call.1} parent=1 // pred_check
      _
    $region11: #{tpu_custom_call.1} parent=1 // pred_check_branch
      %15 = sbr.rel (0) target = $region13
    $region12: #{tpu_custom_call.1} parent=1 // pred_region
      %s17 = ssub.s32 384, 384
      %18 = vsyncadd [#allocation3], %s17
      %s19 = sshll.u32 [#allocation2], 4
      %s20 = int_to_ptr.vmem [resolvable:$true] %s19
      %25 = dma.hbm_to_vmem [thread:$0]  %s2, 384, %s20, [#allocation3], 128, 128, 8
    $region13: #{tpu_custom_call.1} parent=1 // pred_fallthru
      _
    // Predicated region
    $region14: #{tpu_custom_call.1} parent=1 // pred_check
      _
    $region15: #{tpu_custom_call.1} parent=1 // pred_check_branch
      %27 = sbr.rel (0) target = $region17
    $region16: #{tpu_custom_call.1} parent=1 // pred_region
      %28 = dma.done [#allocation3], 384
    $region17: #{tpu_custom_call.1} parent=1 // pred_fallthru
      _
    %v29 = vld [vmem:[%s0] sm:$0xff]
    %v30 = vld [vmem:[%s1] sm:$0x1]
    %v31 = vld [vmem:[#allocation2] sm:$0xff]
    %v32 = vld [vmem:[#allocation2 + $0x10] sm:$0xf]
    %vm33 = vcmask 64512
    %v35 = vsel %vm33, %v30, 0
    %37 = vmatprep.subr.mxu0 0.0
    %38 = vmatpush1.msra.mxu0 %v31
    %39 = vmatprep.subr.mxu0 0.0
    %40 = vmatpush1.msra.mxu0 0.0
    %41 = vmatprep.subr.mxu0 0.0
    %42 = vmatpush1.msra.mxu0 0.0
    %43 = vmatprep.subr.mxu0 0.0
    %44 = vmatpush1.msra.mxu0 0.0
    %45 = vmatprep.subr.mxu0 0.0
    %46 = vmatpush1.msra.mxu0 0.0
    %47 = vmatprep.subr.mxu0 0.0
    %48 = vmatpush1.msra.mxu0 0.0
    %49 = vmatprep.subr.mxu0 0.0
    %50 = vmatpush1.msra.mxu0 0.0
    %51 = vmatprep.subr.mxu0 0.0
    %52 = vmatpush1.msra.mxu0 0.0
    %53 = vmatprep.subr.mxu0 0.0
    %54 = vmatpush1.msra.mxu0 0.0
    %55 = vmatprep.subr.mxu0 0.0
    %56 = vmatpush1.msra.mxu0 0.0
    %57 = vmatprep.subr.mxu0 0.0
    %58 = vmatpush1.msra.mxu0 0.0
    %59 = vmatprep.subr.mxu0 0.0
    %60 = vmatpush1.msra.mxu0 0.0
    %61 = vmatprep.subr.mxu0 0.0
    %62 = vmatpush1.msra.mxu0 0.0
    %63 = vmatprep.subr.mxu0 0.0
    %64 = vmatpush1.msra.mxu0 0.0
    %65 = vmatprep.subr.mxu0 0.0
    %66 = vmatpush1.msra.mxu0 0.0
    %67 = vmatprep.subr.mxu0 0.0
    %68 = vmatpush1.msra.mxu0 0.0
    %69 = vmatprep.subr.mxu0 0.0
    %70 = vmatpush1.msra.mxu0 0.0
    %71 = vmatprep.subr.mxu0 0.0
    %72 = vmatpush1.msra.mxu0 0.0
    %73 = vmatprep.subr.mxu0 0.0
    %74 = vmatpush1.msra.mxu0 0.0
    %75 = vmatprep.subr.mxu0 0.0
    %76 = vmatpush1.msra.mxu0 0.0
    %77 = vmatprep.subr.mxu0 0.0
    %78 = vmatpush1.msra.mxu0 0.0
    %79 = vmatprep.subr.mxu0 0.0
    %80 = vmatpush1.msra.mxu0 0.0
    %81 = vmatprep.subr.mxu0 0.0
    %82 = vmatpush1.msra.mxu0 0.0
    %83 = vmatprep.subr.mxu0 0.0
    %84 = vmatpush1.msra.mxu0 0.0
    %85 = vmatprep.subr.mxu0 0.0
    %86 = vmatpush1.msra.mxu0 0.0
    %87 = vmatprep.subr.mxu0 0.0
    %88 = vmatpush1.msra.mxu0 0.0
    %89 = vmatprep.subr.mxu0 0.0
    %90 = vmatpush1.msra.mxu0 0.0
    %91 = vmatprep.subr.mxu0 0.0
    %92 = vmatpush1.msra.mxu0 0.0
    %93 = vmatprep.subr.mxu0 0.0
    %94 = vmatpush1.msra.mxu0 0.0
    %95 = vmatprep.subr.mxu0 0.0
    %96 = vmatpush1.msra.mxu0 0.0
    %97 = vmatprep.subr.mxu0 0.0
    %98 = vmatpush1.msra.mxu0 0.0
    %99 = vmatprep.subr.mxu0 0.0
    %100 = vmatpush1.msra.mxu0 0.0
    %101 = vmatprep.mubr.f32.mxu0 0.0
    %102 = vmatmul.mubr.f32.gmra.mrb[0].mxu0 %v35
    %v103 = vpop.f32.mrb[0].mxu0
    %v104 = vadd.f32 0.0, %v103
    %v105 = vpop.f32.mrb[0].mxu0
    %106 = vdwg.mxu0
    %v107 = vlaneseq
    %v108 = vshrl.u32 %v107, 7
    %v109 = vsub.s32 0, %v108
    %v110 = vrot.slane %v104, %v109
    %vm111 = vcmask 31744
    %v113 = vsel %vm111, %v29, 0
    %vm115 = vcmask 1043456
    %v117 = vsel %vm115, %v32, 0
    %119 = vmatprep.subr.mxu0 0.0
    %120 = vmatpush1.msra.mxu0 %v117
    %121 = vmatprep.subr.mxu0 0.0
    %122 = vmatpush1.msra.mxu0 0.0
    %123 = vmatprep.subr.mxu0 0.0
    %124 = vmatpush1.msra.mxu0 0.0
    %125 = vmatprep.subr.mxu0 0.0
    %126 = vmatpush1.msra.mxu0 0.0
    %127 = vmatprep.subr.mxu0 0.0
    %128 = vmatpush1.msra.mxu0 0.0
    %129 = vmatprep.subr.mxu0 0.0
    %130 = vmatpush1.msra.mxu0 0.0
    %131 = vmatprep.subr.mxu0 0.0
    %132 = vmatpush1.msra.mxu0 0.0
    %133 = vmatprep.subr.mxu0 0.0
    %134 = vmatpush1.msra.mxu0 0.0
    %135 = vmatprep.subr.mxu0 0.0
    %136 = vmatpush1.msra.mxu0 0.0
    %137 = vmatprep.subr.mxu0 0.0
    %138 = vmatpush1.msra.mxu0 0.0
    %139 = vmatprep.subr.mxu0 0.0
    %140 = vmatpush1.msra.mxu0 0.0
    %141 = vmatprep.subr.mxu0 0.0
    %142 = vmatpush1.msra.mxu0 0.0
    %143 = vmatprep.subr.mxu0 0.0
    %144 = vmatpush1.msra.mxu0 0.0
    %145 = vmatprep.subr.mxu0 0.0
    %146 = vmatpush1.msra.mxu0 0.0
    %147 = vmatprep.subr.mxu0 0.0
    %148 = vmatpush1.msra.mxu0 0.0
    %149 = vmatprep.subr.mxu0 0.0
    %150 = vmatpush1.msra.mxu0 0.0
    %151 = vmatprep.subr.mxu0 0.0
    %152 = vmatpush1.msra.mxu0 0.0
    %153 = vmatprep.subr.mxu0 0.0
    %154 = vmatpush1.msra.mxu0 0.0
    %155 = vmatprep.subr.mxu0 0.0
    %156 = vmatpush1.msra.mxu0 0.0
    %157 = vmatprep.subr.mxu0 0.0
    %158 = vmatpush1.msra.mxu0 0.0
    %159 = vmatprep.subr.mxu0 0.0
    %160 = vmatpush1.msra.mxu0 0.0
    %161 = vmatprep.subr.mxu0 0.0
    %162 = vmatpush1.msra.mxu0 0.0
    %163 = vmatprep.subr.mxu0 0.0
    %164 = vmatpush1.msra.mxu0 0.0
    %165 = vmatprep.subr.mxu0 0.0
    %166 = vmatpush1.msra.mxu0 0.0
    %167 = vmatprep.subr.mxu0 0.0
    %168 = vmatpush1.msra.mxu0 0.0
    %169 = vmatprep.subr.mxu0 0.0
    %170 = vmatpush1.msra.mxu0 0.0
    %171 = vmatprep.subr.mxu0 0.0
    %172 = vmatpush1.msra.mxu0 0.0
    %173 = vmatprep.subr.mxu0 0.0
    %174 = vmatpush1.msra.mxu0 0.0
    %175 = vmatprep.subr.mxu0 0.0
    %176 = vmatpush1.msra.mxu0 0.0
    %177 = vmatprep.subr.mxu0 0.0
    %178 = vmatpush1.msra.mxu0 0.0
    %179 = vmatprep.subr.mxu0 0.0
    %180 = vmatpush1.msra.mxu0 0.0
    %181 = vmatprep.subr.mxu0 0.0
    %182 = vmatpush1.msra.mxu0 0.0
    %183 = vmatprep.mubr.f32.mxu0 0.0
    %184 = vmatmul.mubr.f32.gmra.mrb[0].mxu0 %v113
    %v185 = vpop.f32.mrb[0].mxu0
    %v186 = vadd.f32 %v110, %v185
    %v187 = vpop.f32.mrb[0].mxu0
    %188 = vdwg.mxu0
    %v189 = vtanh.pop %v186
    %v190 = vld [vmem:[#allocation2 + $0x8] sm:$0x1]
    %192 = vset.pattern.permute.xlu0 0
    %193 = vperm.xlu0 %192, %v189
    %v194 = vpop.permute.xlu0 %193
    %v196 = vlaneseq
    %v197 = vshrl.u32 %v196, 7
    %v198 = vsub.s32 0, %v197
    %v199 = vrot.slane %v190, %v198
    %v200 = vmul.f32 %v194, %v199
    %v201 = vadd.f32 %v186, %v200
    %v202 = vtanh.pop %v201
    %v203 = vld [vmem:[#allocation2 + $0x9] sm:$0x1]
    %205 = vset.pattern.permute.xlu0 1
    %206 = vperm.xlu0 %205, %v202
    %v207 = vpop.permute.xlu0 %206
    %v209 = vlaneseq
    %v210 = vshrl.u32 %v209, 7
    %v211 = vsub.s32 0, %v210
    %v212 = vrot.slane %v203, %v211
    %v213 = vmul.f32 %v207, %v212
    %v214 = vadd.f32 %v201, %v213
    %v215 = vtanh.pop %v214
    %v216 = vld [vmem:[#allocation2 + $0xa] sm:$0x1]
    %218 = vset.pattern.permute.xlu0 2
    %219 = vperm.xlu0 %218, %v215
    %v220 = vpop.permute.xlu0 %219
    %v222 = vlaneseq
    %v223 = vshrl.u32 %v222, 7
    %v224 = vsub.s32 0, %v223
    %v225 = vrot.slane %v216, %v224
    %v226 = vmul.f32 %v220, %v225
    %v227 = vadd.f32 %v214, %v226
    %v228 = vtanh.pop %v227
    %v229 = vld [vmem:[#allocation2 + $0xb] sm:$0x1]
    %231 = vset.pattern.permute.xlu0 3
    %232 = vperm.xlu0 %231, %v228
    %v233 = vpop.permute.xlu0 %232
    %v235 = vlaneseq
    %v236 = vshrl.u32 %v235, 7
    %v237 = vsub.s32 0, %v236
    %v238 = vrot.slane %v229, %v237
    %v239 = vmul.f32 %v233, %v238
    %v240 = vadd.f32 %v227, %v239
    %v241 = vtanh.pop %v240
    %v242 = vld [vmem:[#allocation2 + $0xc] sm:$0x1]
    %244 = vset.pattern.permute.xlu0 4
    %245 = vperm.xlu0 %244, %v241
    %v246 = vpop.permute.xlu0 %245
    %v248 = vlaneseq
    %v249 = vshrl.u32 %v248, 7
    %v250 = vsub.s32 0, %v249
    %v251 = vrot.slane %v242, %v250
    %v252 = vmul.f32 %v246, %v251
    %v253 = vadd.f32 %v240, %v252
    %v254 = vtanh.pop %v253
    %v255 = vld [vmem:[#allocation2 + $0xd] sm:$0x1]
    %257 = vset.pattern.permute.xlu0 5
    %258 = vperm.xlu0 %257, %v254
    %v259 = vpop.permute.xlu0 %258
    %v261 = vlaneseq
    %v262 = vshrl.u32 %v261, 7
    %v263 = vsub.s32 0, %v262
    %v264 = vrot.slane %v255, %v263
    %v265 = vmul.f32 %v259, %v264
    %v266 = vadd.f32 %v253, %v265
    %v267 = vtanh.pop %v266
    %v268 = vld [vmem:[#allocation2 + $0xe] sm:$0x1]
    %270 = vset.pattern.permute.xlu0 6
    %271 = vperm.xlu0 %270, %v267
    %v272 = vpop.permute.xlu0 %271
    %v274 = vlaneseq
    %v275 = vshrl.u32 %v274, 7
    %v276 = vsub.s32 0, %v275
    %v277 = vrot.slane %v268, %v276
    %v278 = vmul.f32 %v272, %v277
    %v279 = vadd.f32 %v266, %v278
    %v280 = vtanh.pop %v279
    %v281 = vld [vmem:[#allocation2 + $0xf] sm:$0x1]
    %283 = vset.pattern.permute.xlu0 7
    %284 = vperm.xlu0 %283, %v280
    %v285 = vpop.permute.xlu0 %284
    %v287 = vlaneseq
    %v288 = vshrl.u32 %v287, 7
    %v289 = vsub.s32 0, %v288
    %v290 = vrot.slane %v281, %v289
    %v291 = vmul.f32 %v285, %v290
    %v292 = vadd.f32 %v279, %v291
    %294 = vrot.lane.b32.xlu0 %v292, 120
    %v295 = vpop.permute.xlu0 %294
    %vm297 = vcmask 80896
    %298 = vst.msk [vmem:[#allocation5] sm:$0xff] %vm297, %v295
    // Predicated region
    $region18: #{tpu_custom_call.1} parent=1 // pred_check
      _
    $region19: #{tpu_custom_call.1} parent=1 // pred_check_branch
      %300 = sbr.rel (0) target = $region21
    $region20: #{tpu_custom_call.1} parent=1 // pred_region
      %s302 = ssub.s32 128, 128
      %303 = vsyncadd [#allocation4], %s302
      %s305 = sshll.u32 [#allocation5], 4
      %s306 = int_to_ptr.vmem [resolvable:$true] %s305
      %308 = dma.vmem_to_hbm [thread:$0]  %s306, 128, %s3, [#allocation4]
    $region21: #{tpu_custom_call.1} parent=1 // pred_fallthru
      _
    // Predicated region
    $region22: #{tpu_custom_call.1} parent=1 // pred_check
      _
    $region23: #{tpu_custom_call.1} parent=1 // pred_check_branch
      %310 = sbr.rel (0) target = $region25
    $region24: #{tpu_custom_call.1} parent=1 // pred_region
      %311 = dma.done [#allocation4], 128
    $region25: #{tpu_custom_call.1} parent=1 // pred_fallthru
      _
    %312 = vsyncpa [#allocation3], 1
    %313 = vsyncpa [#allocation4], 1

</llo_original>
